<compile_context>
chip_gen: v6e
topology: v6e:2x2x1
jax: 0.10.0
libtpu: 0.0.40
codegen_flags: <defaults>
</compile_context>

<pallas_src>
import functools

import jax
import jax.numpy as jnp
from jax.experimental import pallas as pl
from jax.experimental.pallas import tpu as pltpu


def _round_up(x: int, m: int) -> int:
    return ((x + m - 1) // m) * m


# ---------------------------------------------------------------------------
# Pallas kernel: dense NMF compute for one lane-dense batch tile.
# ---------------------------------------------------------------------------
def nmf_kernel(x_ref, w1_ref, b1_ref, w2_ref, b2_ref, wl_ref, bl_ref, out_ref,
               *, dg, dm):
    # x: (2*Dg + 2*Dm, TB)  -- rows: [gmf_u | gmf_i | mlp_u | mlp_i], batch on lanes.
    x = x_ref[...]

    # GMF branch: element-wise product of the (bias-augmented) embeddings.
    gmf = x[0:dg, :] * x[dg:2 * dg, :]                      # (Dg, TB)

    # MLP branch.  The packed rows [mlp_u; mlp_i] already realize the
    # torch.cat([u, i]), so layer 1 is a single MXU matmul.
    mlp_in = x[2 * dg:, :]                                  # (2*Dm, TB)
    h = jnp.dot(w1_ref[...], mlp_in,
                preferred_element_type=jnp.float32) + b1_ref[...]
    h = jnp.maximum(h, 0.0)                                 # (H1, TB)
    h = jnp.dot(w2_ref[...], h,
                preferred_element_type=jnp.float32) + b2_ref[...]
    h = jnp.maximum(h, 0.0)                                 # (H2, TB)

    # Last layer (merged_dim -> 1): VPU multiply + sublane reduce instead of an
    # N=1 MXU matmul.  wl is stored as a column (Dg + H2, 1).
    wl = wl_ref[...]
    logit = (jnp.sum(gmf * wl[0:dg, :], axis=0, keepdims=True)
             + jnp.sum(h * wl[dg:, :], axis=0, keepdims=True)
             + bl_ref[...])                                 # (1, TB), lane-dense
    out_ref[...] = jax.nn.sigmoid(logit)


# ---------------------------------------------------------------------------
# Parameter construction (PyTorch layout: Linear weights are (out, in)).
# ---------------------------------------------------------------------------
def xavier_normal(key, shape):
    std = (2.0 / (shape[0] + shape[1])) ** 0.5
    return jax.random.normal(key, shape, dtype=jnp.float32) * std


def init_nmf_params(key, user_count, item_count,
                    embedding_gmf_dim, embedding_mlp_dim, hidden_mlp_dims):
    ks = jax.random.split(key, 10)
    h1, h2 = hidden_mlp_dims
    dm, dg = embedding_mlp_dim, embedding_gmf_dim
    return {
        # GMF embeddings (xavier normal) + zero per-id biases
        "gmf_user_emb": xavier_normal(ks[0], (user_count, dg)),
        "gmf_item_emb": xavier_normal(ks[1], (item_count, dg)),
        "gmf_user_bias": jnp.zeros((user_count, 1), jnp.float32),
        "gmf_item_bias": jnp.zeros((item_count, 1), jnp.float32),
        # MLP embeddings (xavier normal) + zero per-id biases
        "mlp_user_emb": xavier_normal(ks[2], (user_count, dm)),
        "mlp_item_emb": xavier_normal(ks[3], (item_count, dm)),
        "mlp_user_bias": jnp.zeros((user_count, 1), jnp.float32),
        "mlp_item_bias": jnp.zeros((item_count, 1), jnp.float32),
        # Hidden layers, torch Linear layout (out, in); biases as columns, N(0, 0.001)
        "w1": xavier_normal(ks[4], (h1, 2 * dm)),
        "b1": jax.random.normal(ks[5], (h1, 1), jnp.float32) * 0.001,
        "w2": xavier_normal(ks[6], (h2, h1)),
        "b2": jax.random.normal(ks[7], (h2, 1), jnp.float32) * 0.001,
        # Last layer: torch weight is (1, Dg+H2); store its transpose (column).
        "wl": xavier_normal(ks[8], (1, dg + h2)).T,
        "bl": jax.random.normal(ks[9], (1, 1), jnp.float32) * 0.001,
    }


# ---------------------------------------------------------------------------
# Wrapper: embedding gathers (JAX glue) + pallas_call over lane-dense batch tiles.
# ---------------------------------------------------------------------------
@functools.partial(jax.jit, static_argnames=("tb",))
def nmf_forward(user, item, params, tb=512):
    B = user.shape[0]
    dg = params["gmf_user_emb"].shape[1]
    dm = params["mlp_user_emb"].shape[1]
    h1 = params["w1"].shape[0]
    h2 = params["w2"].shape[0]
    dx = 2 * dg + 2 * dm

    # Lane-dense batch tiles: multiples of 128, clamped to the (padded) batch.
    tb_eff = max(128, min(_round_up(tb, 128), _round_up(B, 128)))
    bp = _round_up(B, tb_eff)

    # Embedding lookups + per-id biases (data-dependent gather: JAX glue).
    gmf_u = params["gmf_user_emb"][user] + params["gmf_user_bias"][user]   # (B, Dg)
    gmf_i = params["gmf_item_emb"][item] + params["gmf_item_bias"][item]   # (B, Dg)
    mlp_u = params["mlp_user_emb"][user] + params["mlp_user_bias"][user]   # (B, Dm)
    mlp_i = params["mlp_item_emb"][item] + params["mlp_item_bias"][item]   # (B, Dm)

    # Pack into one feature-major slab (Dx, Bp) with batch on the lane axis.
    feats = jnp.concatenate([gmf_u, gmf_i, mlp_u, mlp_i], axis=1)          # (B, Dx)
    if bp != B:
        feats = jnp.pad(feats, ((0, bp - B), (0, 0)))
    x = feats.T                                                            # (Dx, Bp)

    resident = lambda r, c: pl.BlockSpec((r, c), lambda i: (0, 0))

    out = pl.pallas_call(
        functools.partial(nmf_kernel, dg=dg, dm=dm),
        out_shape=jax.ShapeDtypeStruct((1, bp), jnp.float32),
        grid=(bp // tb_eff,),
        in_specs=[
            pl.BlockSpec((dx, tb_eff), lambda i: (0, i)),   # packed activations
            resident(h1, 2 * dm), resident(h1, 1),          # w1, b1 (resident)
            resident(h2, h1), resident(h2, 1),              # w2, b2 (resident)
            resident(dg + h2, 1), resident(1, 1),           # wl, bl (resident)
        ],
        out_specs=pl.BlockSpec((1, tb_eff), lambda i: (0, i)),
        compiler_params=pltpu.CompilerParams(
            dimension_semantics=("parallel",)),
    )(x, params["w1"], params["b1"], params["w2"], params["b2"],
      params["wl"], params["bl"])

    return out[0, :B]   # drop batch padding; final shape (B,)


# Pure-JAX reference (mirrors the PyTorch forward) for a correctness check.
def nmf_reference(user, item, params):
    gmf_u = params["gmf_user_emb"][user] + params["gmf_user_bias"][user]
    gmf_i = params["gmf_item_emb"][item] + params["gmf_item_bias"][item]
    mlp_u = params["mlp_user_emb"][user] + params["mlp_user_bias"][user]
    mlp_i = params["mlp_item_emb"][item] + params["mlp_item_bias"][item]
    gmf_vec = gmf_u * gmf_i
    hidden = jnp.concatenate([mlp_u, mlp_i], axis=-1)
    hidden = jnp.maximum(hidden @ params["w1"].T + params["b1"][:, 0], 0.0)
    hidden = jnp.maximum(hidden @ params["w2"].T + params["b2"][:, 0], 0.0)
    merged = jnp.concatenate([gmf_vec, hidden], axis=1)
    logit = merged @ params["wl"] + params["bl"][0]
    return jax.nn.sigmoid(logit[:, 0])


if __name__ == "__main__":
    USER_COUNT = 32
    ITEM_COUNT = 64
    EMB_GMF = 8
    EMB_MLP = 8
    HIDDEN_MLP = [32, 16]
    BATCH = 16

    key = jax.random.PRNGKey(0)
    kp, ku, ki = jax.random.split(key, 3)

    params = init_nmf_params(kp, USER_COUNT, ITEM_COUNT,
                             EMB_GMF, EMB_MLP, HIDDEN_MLP)

    user = jax.random.randint(ku, (BATCH,), 0, USER_COUNT, dtype=jnp.int32)
    item = jax.random.randint(ki, (BATCH,), 0, ITEM_COUNT, dtype=jnp.int32)

    out = jax.block_until_ready(nmf_forward(user, item, params))
    ref = nmf_reference(user, item, params)

    assert out.shape == (BATCH,)
    assert jnp.allclose(out, ref, atol=1e-5, rtol=1e-5), (out, ref)

    print("KERNEL_OK")
</pallas_src>

<mosaic_0001>
module attributes {stable_mosaic.version = 11 : i64} {
  func.func @nmf_kernel(%arg0: i32, %arg1: memref<32x128xf32, #tpu.memory_space<vmem>>, %arg2: memref<32x16xf32, #tpu.memory_space<vmem>>, %arg3: memref<32x1xf32, #tpu.memory_space<vmem>>, %arg4: memref<16x32xf32, #tpu.memory_space<vmem>>, %arg5: memref<16x1xf32, #tpu.memory_space<vmem>>, %arg6: memref<24x1xf32, #tpu.memory_space<vmem>>, %arg7: memref<1x1xf32, #tpu.memory_space<vmem>>, %arg8: memref<1x128xf32, #tpu.memory_space<vmem>>) attributes {dimension_semantics = [#tpu.dimension_semantics<parallel>], iteration_bounds = array<i64: 1>, scalar_prefetch = 0 : i64, scratch_operands = 0 : i64, tpu.core_type = #tpu.core_type<tc>, window_params = [{transform_indices = @transform_0, window_bounds = array<i64: 32, 128>}, {pipeline_mode = #tpu.pipeline_mode<synchronous>, transform_indices = @transform_1, window_bounds = array<i64: 32, 16>}, {pipeline_mode = #tpu.pipeline_mode<synchronous>, transform_indices = @transform_2, window_bounds = array<i64: 32, 1>}, {pipeline_mode = #tpu.pipeline_mode<synchronous>, transform_indices = @transform_3, window_bounds = array<i64: 16, 32>}, {pipeline_mode = #tpu.pipeline_mode<synchronous>, transform_indices = @transform_4, window_bounds = array<i64: 16, 1>}, {pipeline_mode = #tpu.pipeline_mode<synchronous>, transform_indices = @transform_5, window_bounds = array<i64: 24, 1>}, {pipeline_mode = #tpu.pipeline_mode<synchronous>, transform_indices = @transform_6, window_bounds = array<i64: 1, 1>}, {transform_indices = @transform_7, window_bounds = array<i64: 1, 128>}]} {
    %c0 = arith.constant 0 : index
    %c0_0 = arith.constant 0 : index
    %0 = vector.load %arg1[%c0, %c0_0] : memref<32x128xf32, #tpu.memory_space<vmem>>, vector<32x128xf32>
    %1 = vector.extract_strided_slice %0 {offsets = [0, 0], sizes = [8, 128], strides = [1, 1]} : vector<32x128xf32> to vector<8x128xf32>
    %2 = vector.extract_strided_slice %0 {offsets = [8, 0], sizes = [8, 128], strides = [1, 1]} : vector<32x128xf32> to vector<8x128xf32>
    %3 = arith.mulf %1, %2 : vector<8x128xf32>
    %4 = vector.extract_strided_slice %0 {offsets = [16, 0], sizes = [16, 128], strides = [1, 1]} : vector<32x128xf32> to vector<16x128xf32>
    %c0_1 = arith.constant 0 : index
    %c0_2 = arith.constant 0 : index
    %5 = vector.load %arg2[%c0_1, %c0_2] : memref<32x16xf32, #tpu.memory_space<vmem>>, vector<32x16xf32>
    %cst = arith.constant dense<0.000000e+00> : vector<32x128xf32>
    %6 = tpu.matmul %5, %4, %cst {dimension_numbers = #tpu.dot_dimension_numbers<[1], [0], [0], [1], [0, 0, 1, 1], [], []>} : vector<32x16xf32>, vector<16x128xf32>, vector<32x128xf32> -> vector<32x128xf32>
    %c0_3 = arith.constant 0 : index
    %c0_4 = arith.constant 0 : index
    %7 = vector.load %arg3[%c0_3, %c0_4] : memref<32x1xf32, #tpu.memory_space<vmem>>, vector<32x1xf32>
    %8 = vector.broadcast %7 : vector<32x1xf32> to vector<32x128xf32>
    %9 = arith.addf %6, %8 : vector<32x128xf32>
    %cst_5 = arith.constant 0.000000e+00 : f32
    %10 = vector.broadcast %cst_5 : f32 to vector<32x128xf32>
    %11 = arith.maximumf %9, %10 : vector<32x128xf32>
    %c0_6 = arith.constant 0 : index
    %c0_7 = arith.constant 0 : index
    %12 = vector.load %arg4[%c0_6, %c0_7] : memref<16x32xf32, #tpu.memory_space<vmem>>, vector<16x32xf32>
    %cst_8 = arith.constant dense<0.000000e+00> : vector<16x128xf32>
    %13 = tpu.matmul %12, %11, %cst_8 {dimension_numbers = #tpu.dot_dimension_numbers<[1], [0], [0], [1], [0, 0, 1, 1], [], []>} : vector<16x32xf32>, vector<32x128xf32>, vector<16x128xf32> -> vector<16x128xf32>
    %c0_9 = arith.constant 0 : index
    %c0_10 = arith.constant 0 : index
    %14 = vector.load %arg5[%c0_9, %c0_10] : memref<16x1xf32, #tpu.memory_space<vmem>>, vector<16x1xf32>
    %15 = vector.broadcast %14 : vector<16x1xf32> to vector<16x128xf32>
    %16 = arith.addf %13, %15 : vector<16x128xf32>
    %cst_11 = arith.constant 0.000000e+00 : f32
    %17 = vector.broadcast %cst_11 : f32 to vector<16x128xf32>
    %18 = arith.maximumf %16, %17 : vector<16x128xf32>
    %c0_12 = arith.constant 0 : index
    %c0_13 = arith.constant 0 : index
    %19 = vector.load %arg6[%c0_12, %c0_13] : memref<24x1xf32, #tpu.memory_space<vmem>>, vector<24x1xf32>
    %20 = vector.extract_strided_slice %19 {offsets = [0, 0], sizes = [8, 1], strides = [1, 1]} : vector<24x1xf32> to vector<8x1xf32>
    %21 = vector.broadcast %20 : vector<8x1xf32> to vector<8x128xf32>
    %22 = arith.mulf %3, %21 : vector<8x128xf32>
    %cst_14 = arith.constant dense<0.000000e+00> : vector<128xf32>
    %23 = vector.multi_reduction <add>, %22, %cst_14 [0] : vector<8x128xf32> to vector<128xf32>
    %24 = vector.shape_cast %23 : vector<128xf32> to vector<1x128xf32>
    %25 = vector.extract_strided_slice %19 {offsets = [8, 0], sizes = [16, 1], strides = [1, 1]} : vector<24x1xf32> to vector<16x1xf32>
    %26 = vector.broadcast %25 : vector<16x1xf32> to vector<16x128xf32>
    %27 = arith.mulf %18, %26 : vector<16x128xf32>
    %cst_15 = arith.constant dense<0.000000e+00> : vector<128xf32>
    %28 = vector.multi_reduction <add>, %27, %cst_15 [0] : vector<16x128xf32> to vector<128xf32>
    %29 = vector.shape_cast %28 : vector<128xf32> to vector<1x128xf32>
    %30 = arith.addf %24, %29 : vector<1x128xf32>
    %c0_16 = arith.constant 0 : index
    %c0_17 = arith.constant 0 : index
    %31 = vector.load %arg7[%c0_16, %c0_17] : memref<1x1xf32, #tpu.memory_space<vmem>>, vector<1x1xf32>
    %32 = vector.broadcast %31 : vector<1x1xf32> to vector<1x128xf32>
    %33 = arith.addf %30, %32 : vector<1x128xf32>
    %34 = arith.negf %33 : vector<1x128xf32>
    %35 = math.exp %34 : vector<1x128xf32>
    %cst_18 = arith.constant 1.000000e+00 : f32
    %36 = vector.broadcast %cst_18 : f32 to vector<1x128xf32>
    %37 = arith.addf %36, %35 : vector<1x128xf32>
    %38 = arith.divf %36, %37 : vector<1x128xf32>
    %c0_19 = arith.constant 0 : index
    %c0_20 = arith.constant 0 : index
    %39 = vector.load %arg8[%c0_19, %c0_20] : memref<1x128xf32, #tpu.memory_space<vmem>>, vector<1x128xf32>
    tpu.vector_store %arg8[%c0_19, %c0_20], %38 {strides = array<i32>} : memref<1x128xf32, #tpu.memory_space<vmem>>, vector<1x128xf32>,
    return
  }
  func.func @transform_0(%arg0: i32) -> (i32, i32) {
    %c0_i32 = arith.constant 0 : i32
    %c0_i32_0 = arith.constant 0 : i32
    return %c0_i32, %arg0 : i32, i32
  }
  func.func @transform_1(%arg0: i32) -> (i32, i32) {
    %c0_i32 = arith.constant 0 : i32
    %c0_i32_0 = arith.constant 0 : i32
    %c0_i32_1 = arith.constant 0 : i32
    return %c0_i32, %c0_i32_0 : i32, i32
  }
  func.func @transform_2(%arg0: i32) -> (i32, i32) {
    %c0_i32 = arith.constant 0 : i32
    %c0_i32_0 = arith.constant 0 : i32
    %c0_i32_1 = arith.constant 0 : i32
    return %c0_i32, %c0_i32_0 : i32, i32
  }
  func.func @transform_3(%arg0: i32) -> (i32, i32) {
    %c0_i32 = arith.constant 0 : i32
    %c0_i32_0 = arith.constant 0 : i32
    %c0_i32_1 = arith.constant 0 : i32
    return %c0_i32, %c0_i32_0 : i32, i32
  }
  func.func @transform_4(%arg0: i32) -> (i32, i32) {
    %c0_i32 = arith.constant 0 : i32
    %c0_i32_0 = arith.constant 0 : i32
    %c0_i32_1 = arith.constant 0 : i32
    return %c0_i32, %c0_i32_0 : i32, i32
  }
  func.func @transform_5(%arg0: i32) -> (i32, i32) {
    %c0_i32 = arith.constant 0 : i32
    %c0_i32_0 = arith.constant 0 : i32
    %c0_i32_1 = arith.constant 0 : i32
    return %c0_i32, %c0_i32_0 : i32, i32
  }
  func.func @transform_6(%arg0: i32) -> (i32, i32) {
    %c0_i32 = arith.constant 0 : i32
    %c0_i32_0 = arith.constant 0 : i32
    %c0_i32_1 = arith.constant 0 : i32
    return %c0_i32, %c0_i32_0 : i32, i32
  }
  func.func @transform_7(%arg0: i32) -> (i32, i32) {
    %c0_i32 = arith.constant 0 : i32
    %c0_i32_0 = arith.constant 0 : i32
    return %c0_i32, %arg0 : i32, i32
  }
}

</mosaic_0001>

<llo_original>
// kernel: nmf_forward.1
$region0: #{nmf_forward.1}
  #allocation0 [shape = 'u32[]', space=smem, size = 0x4, offset = 0x4, fixed_abs, tag = 'smem constant byte address 0x4 - core index']
  #allocation1 [shape = 'u32[144,128]{1,0:T(1,128)}', space=vmem, size = 0x12000, scoped, tag = 'internal scratch']
  #allocation2 [shape = 'f32[1,1]{1,0:T(1,128)S(1)}', space=vmem, size = 0x200, scoped, tag = 'scoped memory for nmf_forward.1']
  %s0 = inlined_call_operand.vmem [shape: f32[32,128], index: 0, kind: input, shape index: {}]
  %s1 = inlined_call_operand.vmem [shape: f32[32,16], index: 1, kind: input, shape index: {}]
  %s2 = inlined_call_operand.vmem [shape: f32[32,1], index: 2, kind: input, shape index: {}]
  %s3 = inlined_call_operand.vmem [shape: f32[16,32], index: 3, kind: input, shape index: {}]
  %s4 = inlined_call_operand.vmem [shape: f32[16,1], index: 4, kind: input, shape index: {}]
  %s5 = inlined_call_operand.vmem [shape: f32[24,1], index: 5, kind: input, shape index: {}]
  %s6 = inlined_call_operand.<no memory space> [shape: f32[1,1], index: 6, kind: input, shape index: {}]
  %s7 = inlined_call_operand.vmem [shape: f32[1,128], index: 7, kind: output, shape index: {}]
  %s8 = sld [smem:[#allocation0]]
  $region38: #{nmf_forward.1} parent=0
    _
  %s10 = ssub.s32 1, %s8
  %s11 = scalar_select 0, %s10, %s8
  %v12 = vstv %s6
  %13 = vst [vmem:[#allocation2] sm:$0x1] %v12
  // Predicated region
  $region2: #{nmf_forward.1} parent=0 // pred_check
    _
  $region3: #{nmf_forward.1} parent=0 // pred_check_branch
    %15 = sbr.rel (0) target = $region5
  $region4: #{nmf_forward.1} parent=0 // pred_region
    _
  $region5: #{nmf_forward.1} parent=0 // pred_fallthru
    _
  // Predicated region
  $region6: #{nmf_forward.1} parent=0 // pred_check
    _
  $region7: #{nmf_forward.1} parent=0 // pred_check_branch
    %17 = sbr.rel (0) target = $region9
  $region8: #{nmf_forward.1} parent=0 // pred_region
    _
  $region9: #{nmf_forward.1} parent=0 // pred_fallthru
    _
  // Predicated region
  $region10: #{nmf_forward.1} parent=0 // pred_check
    _
  $region11: #{nmf_forward.1} parent=0 // pred_check_branch
    %19 = sbr.rel (0) target = $region13
  $region12: #{nmf_forward.1} parent=0 // pred_region
    _
  $region13: #{nmf_forward.1} parent=0 // pred_fallthru
    _
  // Predicated region
  $region14: #{nmf_forward.1} parent=0 // pred_check
    _
  $region15: #{nmf_forward.1} parent=0 // pred_check_branch
    %21 = sbr.rel (0) target = $region17
  $region16: #{nmf_forward.1} parent=0 // pred_region
    _
  $region17: #{nmf_forward.1} parent=0 // pred_fallthru
    _
  // Predicated region
  $region18: #{nmf_forward.1} parent=0 // pred_check
    _
  $region19: #{nmf_forward.1} parent=0 // pred_check_branch
    %23 = sbr.rel (0) target = $region21
  $region20: #{nmf_forward.1} parent=0 // pred_region
    _
  $region21: #{nmf_forward.1} parent=0 // pred_fallthru
    _
  // Predicated region
  $region22: #{nmf_forward.1} parent=0 // pred_check
    _
  $region23: #{nmf_forward.1} parent=0 // pred_check_branch
    %25 = sbr.rel (0) target = $region25
  $region24: #{nmf_forward.1} parent=0 // pred_region
    _
  $region25: #{nmf_forward.1} parent=0 // pred_fallthru
    _
  // Predicated region
  $region26: #{nmf_forward.1} parent=0 // pred_check
    _
  $region27: #{nmf_forward.1} parent=0 // pred_check_branch
    %27 = sbr.rel (0) target = $region29
  $region28: #{nmf_forward.1} parent=0 // pred_region
    _
  $region29: #{nmf_forward.1} parent=0 // pred_fallthru
    _
  %v28 = vld [vmem:[%s0] sm:$0xff]
  %v29 = vld [vmem:[%s0 + $0x8] sm:$0xff]
  %v30 = vld [vmem:[%s0 + $0x10] sm:$0xff]
  %v31 = vld [vmem:[%s0 + $0x18] sm:$0xff]
  %v32 = vmul.f32 %v28, %v29
  %v33 = vld [vmem:[%s1] sm:$0xff]
  %v34 = vld [vmem:[%s1 + $0x8] sm:$0xff]
  %v35 = vld [vmem:[%s1 + $0x10] sm:$0xff]
  %v36 = vld [vmem:[%s1 + $0x18] sm:$0xff]
  %v37 = vld [vmem:[%s2] sm:$0xff]
  %v38 = vld [vmem:[%s2 + $0x8] sm:$0xff]
  %v39 = vld [vmem:[%s2 + $0x10] sm:$0xff]
  %v40 = vld [vmem:[%s2 + $0x18] sm:$0xff]
  %42 = vset.pattern.permute.xlu0 0
  %43 = vperm.xlu0 %42, %v37
  %v44 = vpop.permute.xlu0 %43
  %47 = vset.pattern.permute.xlu0 0
  %48 = vperm.xlu0 %47, %v38
  %v49 = vpop.permute.xlu0 %48
  %52 = vset.pattern.permute.xlu0 0
  %53 = vperm.xlu0 %52, %v39
  %v54 = vpop.permute.xlu0 %53
  %57 = vset.pattern.permute.xlu0 0
  %58 = vperm.xlu0 %57, %v40
  %v59 = vpop.permute.xlu0 %58
  %vm61 = vcmask 130048
  %v63 = vsel %vm61, %v33, 0
  %v66 = vsel %vm61, %v34, 0
  %v69 = vsel %vm61, %v35, 0
  %v72 = vsel %vm61, %v36, 0
  %74 = vmatprep.subr.mxu0 0.0
  %75 = vmatpush1.msra.mxu0 0.0
  %76 = vmatprep.subr.mxu0 0.0
  %77 = vmatpush1.msra.mxu0 0.0
  %78 = vmatprep.subr.mxu0 0.0
  %79 = vmatpush1.msra.mxu0 0.0
  %80 = vmatprep.subr.mxu0 0.0
  %81 = vmatpush1.msra.mxu0 0.0
  %82 = vmatprep.subr.mxu0 0.0
  %83 = vmatpush1.msra.mxu0 0.0
  %84 = vmatprep.subr.mxu0 0.0
  %85 = vmatpush1.msra.mxu0 0.0
  %86 = vmatprep.subr.mxu0 0.0
  %87 = vmatpush1.msra.mxu0 0.0
  %88 = vmatprep.subr.mxu0 0.0
  %89 = vmatpush1.msra.mxu0 0.0
  %90 = vmatprep.subr.mxu0 0.0
  %91 = vmatpush1.msra.mxu0 0.0
  %92 = vmatprep.subr.mxu0 0.0
  %93 = vmatpush1.msra.mxu0 0.0
  %94 = vmatprep.subr.mxu0 0.0
  %95 = vmatpush1.msra.mxu0 0.0
  %96 = vmatprep.subr.mxu0 0.0
  %97 = vmatpush1.msra.mxu0 0.0
  %98 = vmatprep.subr.mxu0 0.0
  %99 = vmatpush1.msra.mxu0 0.0
  %100 = vmatprep.subr.mxu0 0.0
  %101 = vmatpush1.msra.mxu0 0.0
  %102 = vmatprep.subr.mxu0 0.0
  %103 = vmatpush1.msra.mxu0 %v31
  %104 = vmatprep.subr.mxu0 0.0
  %105 = vmatpush1.msra.mxu0 %v30
  %106 = vmatprep.subr.mxu0 0.0
  %107 = vmatpush2.msra.mxu0 0.0
  %108 = vmatprep.subr.mxu0 0.0
  %109 = vmatpush2.msra.mxu0 0.0
  %110 = vmatprep.subr.mxu0 0.0
  %111 = vmatpush2.msra.mxu0 0.0
  %112 = vmatprep.subr.mxu0 0.0
  %113 = vmatpush2.msra.mxu0 0.0
  %114 = vmatprep.subr.mxu0 0.0
  %115 = vmatpush2.msra.mxu0 0.0
  %116 = vmatprep.subr.mxu0 0.0
  %117 = vmatpush2.msra.mxu0 0.0
  %118 = vmatprep.subr.mxu0 0.0
  %119 = vmatpush2.msra.mxu0 0.0
  %120 = vmatprep.subr.mxu0 0.0
  %121 = vmatpush2.msra.mxu0 0.0
  %122 = vmatprep.subr.mxu0 0.0
  %123 = vmatpush2.msra.mxu0 0.0
  %124 = vmatprep.subr.mxu0 0.0
  %125 = vmatpush2.msra.mxu0 0.0
  %126 = vmatprep.subr.mxu0 0.0
  %127 = vmatpush2.msra.mxu0 0.0
  %128 = vmatprep.subr.mxu0 0.0
  %129 = vmatpush2.msra.mxu0 0.0
  %130 = vmatprep.subr.mxu0 0.0
  %131 = vmatpush2.msra.mxu0 0.0
  %132 = vmatprep.subr.mxu0 0.0
  %133 = vmatpush2.msra.mxu0 0.0
  %134 = vmatprep.subr.mxu0 0.0
  %135 = vmatpush2.msra.mxu0 0.0
  %136 = vmatprep.subr.mxu0 0.0
  %137 = vmatpush2.msra.mxu0 0.0
  %138 = vmatprep.mubr.f32.mxu0 0.0
  %139 = vmatmul.mubr.f32.gmra.mxu0 %v63
  %v140 = vpop.f32.mrf.mxu0
  %v141 = vadd.f32 %v44, %v140
  %v142 = vpop.f32.mrf.mxu0
  %143 = vmatprep.mubr.f32.mxu0 0.0
  %144 = vmatmul.mubr.f32.gmra.mxu0 %v66
  %v145 = vpop.f32.mrf.mxu0
  %v146 = vadd.f32 %v49, %v145
  %v147 = vpop.f32.mrf.mxu0
  %148 = vmatprep.mubr.f32.mxu0 0.0
  %149 = vmatmul.mubr.f32.gmra.mxu0 %v69
  %v150 = vpop.f32.mrf.mxu0
  %v151 = vadd.f32 %v54, %v150
  %v152 = vpop.f32.mrf.mxu0
  %153 = vmatprep.mubr.f32.mxu0 0.0
  %154 = vmatmul.mubr.f32.gmra.mxu0 %v72
  %v155 = vpop.f32.mrf.mxu0
  %v156 = vadd.f32 %v59, %v155
  %v157 = vpop.f32.mrf.mxu0
  %158 = vdwg.mxu0
  %v159 = vmax.f32 %v141, 0.0
  %v160 = vmax.f32 %v146, 0.0
  %v161 = vmax.f32 %v151, 0.0
  %v162 = vmax.f32 %v156, 0.0
  %v163 = vld [vmem:[%s3] sm:$0xff]
  %v164 = vld [vmem:[%s3 + $0x8] sm:$0xff]
  %v165 = vld [vmem:[%s4] sm:$0xff]
  %v166 = vld [vmem:[%s4 + $0x8] sm:$0xff]
  %168 = vset.pattern.permute.xlu0 0
  %169 = vperm.xlu0 %168, %v165
  %v170 = vpop.permute.xlu0 %169
  %173 = vset.pattern.permute.xlu0 0
  %174 = vperm.xlu0 %173, %v166
  %v175 = vpop.permute.xlu0 %174
  %vm177 = vcmask 261120
  %v179 = vsel %vm177, %v163, 0
  %v182 = vsel %vm177, %v164, 0
  %184 = vmatprep.subr.mxu0 0.0
  %185 = vmatpush1.msra.mxu0 0.0
  %186 = vmatprep.subr.mxu0 0.0
  %187 = vmatpush1.msra.mxu0 0.0
  %188 = vmatprep.subr.mxu0 0.0
  %189 = vmatpush1.msra.mxu0 0.0
  %190 = vmatprep.subr.mxu0 0.0
  %191 = vmatpush1.msra.mxu0 0.0
  %192 = vmatprep.subr.mxu0 0.0
  %193 = vmatpush1.msra.mxu0 0.0
  %194 = vmatprep.subr.mxu0 0.0
  %195 = vmatpush1.msra.mxu0 0.0
  %196 = vmatprep.subr.mxu0 0.0
  %197 = vmatpush1.msra.mxu0 0.0
  %198 = vmatprep.subr.mxu0 0.0
  %199 = vmatpush1.msra.mxu0 0.0
  %200 = vmatprep.subr.mxu0 0.0
  %201 = vmatpush1.msra.mxu0 0.0
  %202 = vmatprep.subr.mxu0 0.0
  %203 = vmatpush1.msra.mxu0 0.0
  %204 = vmatprep.subr.mxu0 0.0
  %205 = vmatpush1.msra.mxu0 0.0
  %206 = vmatprep.subr.mxu0 0.0
  %207 = vmatpush1.msra.mxu0 0.0
  %208 = vmatprep.subr.mxu0 0.0
  %209 = vmatpush1.msra.mxu0 %v162
  %210 = vmatprep.subr.mxu0 0.0
  %211 = vmatpush1.msra.mxu0 %v161
  %212 = vmatprep.subr.mxu0 0.0
  %213 = vmatpush1.msra.mxu0 %v160
  %214 = vmatprep.subr.mxu0 0.0
  %215 = vmatpush1.msra.mxu0 %v159
  %216 = vmatprep.subr.mxu0 0.0
  %217 = vmatpush2.msra.mxu0 0.0
  %218 = vmatprep.subr.mxu0 0.0
  %219 = vmatpush2.msra.mxu0 0.0
  %220 = vmatprep.subr.mxu0 0.0
  %221 = vmatpush2.msra.mxu0 0.0
  %222 = vmatprep.subr.mxu0 0.0
  %223 = vmatpush2.msra.mxu0 0.0
  %224 = vmatprep.subr.mxu0 0.0
  %225 = vmatpush2.msra.mxu0 0.0
  %226 = vmatprep.subr.mxu0 0.0
  %227 = vmatpush2.msra.mxu0 0.0
  %228 = vmatprep.subr.mxu0 0.0
  %229 = vmatpush2.msra.mxu0 0.0
  %230 = vmatprep.subr.mxu0 0.0
  %231 = vmatpush2.msra.mxu0 0.0
  %232 = vmatprep.subr.mxu0 0.0
  %233 = vmatpush2.msra.mxu0 0.0
  %234 = vmatprep.subr.mxu0 0.0
  %235 = vmatpush2.msra.mxu0 0.0
  %236 = vmatprep.subr.mxu0 0.0
  %237 = vmatpush2.msra.mxu0 0.0
  %238 = vmatprep.subr.mxu0 0.0
  %239 = vmatpush2.msra.mxu0 0.0
  %240 = vmatprep.subr.mxu0 0.0
  %241 = vmatpush2.msra.mxu0 0.0
  %242 = vmatprep.subr.mxu0 0.0
  %243 = vmatpush2.msra.mxu0 0.0
  %244 = vmatprep.subr.mxu0 0.0
  %245 = vmatpush2.msra.mxu0 0.0
  %246 = vmatprep.subr.mxu0 0.0
  %247 = vmatpush2.msra.mxu0 0.0
  %248 = vmatprep.mubr.f32.mxu0 0.0
  %249 = vmatmul.mubr.f32.gmra.mxu0 %v179
  %v250 = vpop.f32.mrf.mxu0
  %v251 = vadd.f32 %v170, %v250
  %v252 = vpop.f32.mrf.mxu0
  %253 = vmatprep.mubr.f32.mxu0 0.0
  %254 = vmatmul.mubr.f32.gmra.mxu0 %v182
  %v255 = vpop.f32.mrf.mxu0
  %v256 = vadd.f32 %v175, %v255
  %v257 = vpop.f32.mrf.mxu0
  %258 = vdwg.mxu0
  %v259 = vmax.f32 %v251, 0.0
  %v260 = vmax.f32 %v256, 0.0
  %v261 = vld [vmem:[%s5] sm:$0xff]
  %v262 = vld [vmem:[%s5 + $0x8] sm:$0xff]
  %v263 = vld [vmem:[%s5 + $0x10] sm:$0xff]
  %265 = vset.pattern.permute.xlu0 0
  %266 = vperm.xlu0 %265, %v261
  %v267 = vpop.permute.xlu0 %266
  %v269 = vmul.f32 %v32, %v267
  %v270 = vrot.slane %v269, 4
  %v271 = vadd.f32 %v269, %v270
  %v272 = vrot.slane %v271, 2
  %v273 = vadd.f32 %v271, %v272
  %v274 = vrot.slane %v273, 1
  %v275 = vadd.f32 %v273, %v274
  %277 = vset.pattern.permute.xlu0 0
  %278 = vperm.xlu0 %277, %v262
  %v279 = vpop.permute.xlu0 %278
  %282 = vset.pattern.permute.xlu0 0
  %283 = vperm.xlu0 %282, %v263
  %v284 = vpop.permute.xlu0 %283
  %v286 = vmul.f32 %v259, %v279
  %v287 = vmul.f32 %v260, %v284
  %v288 = vadd.f32 %v286, %v287
  %v289 = vrot.slane %v288, 4
  %v290 = vadd.f32 %v288, %v289
  %v291 = vrot.slane %v290, 2
  %v292 = vadd.f32 %v290, %v291
  %v293 = vrot.slane %v292, 1
  %v294 = vadd.f32 %v292, %v293
  %v295 = vadd.f32 %v275, %v294
  %v296 = vld [vmem:[#allocation2] sm:$0x1]
  %298 = vset.pattern.permute.xlu0 0
  %299 = vperm.xlu0 %298, %v296
  %v300 = vpop.permute.xlu0 %299
  %v302 = vlaneseq
  %v303 = vshrl.u32 %v302, 7
  %v304 = vsub.s32 0, %v303
  %v305 = vrot.slane %v300, %v304
  %v306 = vadd.f32 %v295, %v305
  %v307 = vxor.u32 %v306, 2147483648
  %v308 = vmul.f32 %v307, 1.442695
  %v309 = vpow.pop %v308
  %v310 = vadd.f32 %v309, 1.0
  %v311 = vrcp.pop %v310
  %v312 = vmul.f32 1.0, %v311
  %313 = vst [vmem:[%s7] sm:$0x1] %v312
  // Predicated region
  $region30: #{nmf_forward.1} parent=0 // pred_check
    _
  $region31: #{nmf_forward.1} parent=0 // pred_check_branch
    %315 = sbr.rel (0) target = $region33
  $region32: #{nmf_forward.1} parent=0 // pred_region
    _
  $region33: #{nmf_forward.1} parent=0 // pred_fallthru
    _
  // Predicated region
  $region34: #{nmf_forward.1} parent=0 // pred_check
    _
  $region35: #{nmf_forward.1} parent=0 // pred_check_branch
    %317 = sbr.rel (0) target = $region37
  $region36: #{nmf_forward.1} parent=0 // pred_region
    _
  $region37: #{nmf_forward.1} parent=0 // pred_fallthru
    _

</llo_original>
